<compile_context>
chip_gen: v7x
topology: tpu7x:2x2x1
jax: 0.10.0
libtpu: 0.0.40
codegen_flags: <defaults>
</compile_context>

<pallas_src>
import math

import jax
import jax.numpy as jnp
from jax.experimental import pallas as pl
from jax.experimental.pallas import tpu as pltpu


def _agender_head_kernel(xg_ref, xa_ref, wg_ref, wa_ref, bg_ref, ba_ref,
                         gen_ref, age_ref):
    # xg_ref, xa_ref : (TM, D)  activation row-tiles (input dtype, e.g. f32)
    # wg_ref : (D, 2) bf16, wa_ref : (D, 1) bf16   -- VMEM-resident weights
    # bg_ref : (1, 2) f32,  ba_ref : (1, 1) f32    -- biases
    # gen_ref: (TM, 2) f32, age_ref: (TM, 1) f32
    xg = xg_ref[...].astype(jnp.bfloat16)
    xa = xa_ref[...].astype(jnp.bfloat16)
    gen = jnp.dot(xg, wg_ref[...], preferred_element_type=jnp.float32)
    age = jnp.dot(xa, wa_ref[...], preferred_element_type=jnp.float32)
    gen_ref[...] = (gen + bg_ref[...]).astype(gen_ref.dtype)
    age_ref[...] = (age + ba_ref[...]).astype(age_ref.dtype)


def pack_params(wg, bg, wa, ba):
    """One-time parameter packing (call at load time, NOT per forward).

    wg : (2, D), bg : (2,)  -- fc_gender (nn.Linear) params
    wa : (1, D), ba : (1,)  -- fc_age    (nn.Linear) params
    """
    return dict(
        wg_t=jnp.asarray(wg, jnp.float32).T.astype(jnp.bfloat16),  # (D, 2)
        wa_t=jnp.asarray(wa, jnp.float32).T.astype(jnp.bfloat16),  # (D, 1)
        bg=jnp.asarray(bg, jnp.float32).reshape(1, 2),             # (1, 2)
        ba=jnp.asarray(ba, jnp.float32).reshape(1, 1),             # (1, 1)
    )


def _pick_tm(B, D, itemsize):
    """Row-tile size: cap 2 inputs x 2 buffers x TM x D x itemsize ~ 8 MiB."""
    budget = 8 * 1024 * 1024
    cap = max(8, (budget // (4 * D * itemsize)) // 8 * 8)
    cap = min(cap, 1024)
    if B <= cap:
        return B          # single block == full first dim (always legal)
    return cap            # multiple of 8; partial last block handled by Pallas


def agender_classification_head_v2(params, x_gender, x_age):
    """Pallas forward of AGenderClassificationHeadV2.

    params   : output of pack_params()
    x_gender : (B, D), x_age : (B, D)
    Returns {'gen': (B, 2), 'age': squeeze of (B, 1)} (mirrors PyTorch
    .squeeze(): becomes a 0-d scalar when B == 1).
    """
    B, D = x_gender.shape
    itemsize = x_gender.dtype.itemsize
    tm = _pick_tm(B, D, itemsize)
    grid = (pl.cdiv(B, tm),)

    # VMEM budget (double-buffered activations + outputs + resident weights).
    act_bytes = 2 * 2 * tm * D * itemsize
    out_bytes = 2 * 2 * tm * 3 * 4
    wgt_bytes = 2 * D * 3 * 2 + 4096
    vmem_limit = int(min(64 << 20,
                         max(16 << 20,
                             2 * (act_bytes + out_bytes + wgt_bytes) + (4 << 20))))

    cost = pl.CostEstimate(
        flops=2 * B * D * 3,                       # (B,D)@(D,2) + (B,D)@(D,1)
        transcendentals=0,
        bytes_accessed=2 * B * D * itemsize + D * 3 * 2 + 12 + B * 3 * 4,
    )

    gen, age = pl.pallas_call(
        _agender_head_kernel,
        out_shape=(jax.ShapeDtypeStruct((B, 2), jnp.float32),
                   jax.ShapeDtypeStruct((B, 1), jnp.float32)),
        grid_spec=pltpu.PrefetchScalarGridSpec(
            num_scalar_prefetch=0,
            grid=grid,
            in_specs=[
                pl.BlockSpec((tm, D), lambda i: (i, 0)),   # x_gender row tile
                pl.BlockSpec((tm, D), lambda i: (i, 0)),   # x_age    row tile
                pl.BlockSpec((D, 2), lambda i: (0, 0)),    # Wg^T (resident)
                pl.BlockSpec((D, 1), lambda i: (0, 0)),    # Wa^T (resident)
                pl.BlockSpec((1, 2), lambda i: (0, 0)),    # bg   (resident)
                pl.BlockSpec((1, 1), lambda i: (0, 0)),    # ba   (resident)
            ],
            out_specs=[
                pl.BlockSpec((tm, 2), lambda i: (i, 0)),   # gen
                pl.BlockSpec((tm, 1), lambda i: (i, 0)),   # age
            ],
        ),
        compiler_params=pltpu.CompilerParams(
            dimension_semantics=("parallel",),             # v7x: 2 TCs; no-op v5e/v6e
            vmem_limit_bytes=vmem_limit),
        cost_estimate=cost,
    )(x_gender, x_age, params["wg_t"], params["wa_t"], params["bg"], params["ba"])

    # Mirrors PyTorch x_age.squeeze() (drops the trailing size-1 dim; also the
    # batch dim if B == 1).
    return {"gen": gen, "age": jnp.squeeze(age)}


def _reference(x_gender, x_age, wg, bg, wa, ba):
    """Pure-JAX mirror of the PyTorch forward (f32)."""
    gen = x_gender @ wg.T + bg
    age = x_age @ wa.T + ba
    return {"gen": gen, "age": jnp.squeeze(age)}


if __name__ == "__main__":
    B, D = 2, 256                     # batch, input_size (module default)
    key = jax.random.PRNGKey(0)
    k1, k2, k3, k4, k5, k6 = jax.random.split(key, 6)

    x_gender = jax.random.normal(k1, (B, D), dtype=jnp.float32)
    x_age = jax.random.normal(k2, (B, D), dtype=jnp.float32)

    # nn.Linear default init: uniform +-1/sqrt(fan_in) for weight and bias.
    bound = 1.0 / math.sqrt(D)
    wg = jax.random.uniform(k3, (2, D), jnp.float32, -bound, bound)
    bg = jax.random.uniform(k4, (2,), jnp.float32, -bound, bound)
    wa = jax.random.uniform(k5, (1, D), jnp.float32, -bound, bound)
    ba = jax.random.uniform(k6, (1,), jnp.float32, -bound, bound)

    params = pack_params(wg, bg, wa, ba)           # one-time packing
    fwd = jax.jit(agender_classification_head_v2)

    out = fwd(params, x_gender, x_age)
    out = jax.block_until_ready(out)

    ref = _reference(x_gender, x_age, wg, bg, wa, ba)
    assert out["gen"].shape == (B, 2)
    assert out["age"].shape == (B,)
    # bf16 MXU inputs with f32 accumulation -> tolerance relaxed vs f32 ref.
    assert jnp.allclose(out["gen"], ref["gen"], atol=2e-2, rtol=2e-2), "gen mismatch"
    assert jnp.allclose(out["age"], ref["age"], atol=2e-2, rtol=2e-2), "age mismatch"

    print("KERNEL_OK")
</pallas_src>

<mosaic_0001>
module attributes {stable_mosaic.version = 11 : i64} {
  func.func @_agender_head_kernel(%arg0: i32, %arg1: memref<2x256xf32, #tpu.memory_space<vmem>>, %arg2: memref<2x256xf32, #tpu.memory_space<vmem>>, %arg3: memref<256x2xbf16, #tpu.memory_space<vmem>>, %arg4: memref<256x1xbf16, #tpu.memory_space<vmem>>, %arg5: memref<1x2xf32, #tpu.memory_space<vmem>>, %arg6: memref<1x1xf32, #tpu.memory_space<vmem>>, %arg7: memref<2x2xf32, #tpu.memory_space<vmem>>, %arg8: memref<2x1xf32, #tpu.memory_space<vmem>>) attributes {dimension_semantics = [#tpu.dimension_semantics<parallel>], iteration_bounds = array<i64: 1>, scalar_prefetch = 0 : i64, scratch_operands = 0 : i64, tpu.core_type = #tpu.core_type<tc>, window_params = [{transform_indices = @transform_0, window_bounds = array<i64: 2, 256>}, {transform_indices = @transform_1, window_bounds = array<i64: 2, 256>}, {pipeline_mode = #tpu.pipeline_mode<synchronous>, transform_indices = @transform_2, window_bounds = array<i64: 256, 2>}, {pipeline_mode = #tpu.pipeline_mode<synchronous>, transform_indices = @transform_3, window_bounds = array<i64: 256, 1>}, {pipeline_mode = #tpu.pipeline_mode<synchronous>, transform_indices = @transform_4, window_bounds = array<i64: 1, 2>}, {pipeline_mode = #tpu.pipeline_mode<synchronous>, transform_indices = @transform_5, window_bounds = array<i64: 1, 1>}, {transform_indices = @transform_6, window_bounds = array<i64: 2, 2>}, {transform_indices = @transform_7, window_bounds = array<i64: 2, 1>}]} {
    %c0 = arith.constant 0 : index
    %c0_0 = arith.constant 0 : index
    %0 = vector.load %arg1[%c0, %c0_0] : memref<2x256xf32, #tpu.memory_space<vmem>>, vector<2x256xf32>
    %1 = arith.truncf %0 : vector<2x256xf32> to vector<2x256xbf16>
    %c0_1 = arith.constant 0 : index
    %c0_2 = arith.constant 0 : index
    %2 = vector.load %arg2[%c0_1, %c0_2] : memref<2x256xf32, #tpu.memory_space<vmem>>, vector<2x256xf32>
    %3 = arith.truncf %2 : vector<2x256xf32> to vector<2x256xbf16>
    %c0_3 = arith.constant 0 : index
    %c0_4 = arith.constant 0 : index
    %4 = vector.load %arg3[%c0_3, %c0_4] : memref<256x2xbf16, #tpu.memory_space<vmem>>, vector<256x2xbf16>
    %cst = arith.constant dense<0.000000e+00> : vector<2x2xf32>
    %5 = tpu.matmul %1, %4, %cst {dimension_numbers = #tpu.dot_dimension_numbers<[1], [0], [0], [1], [0, 0, 1, 1], [], []>} : vector<2x256xbf16>, vector<256x2xbf16>, vector<2x2xf32> -> vector<2x2xf32>
    %c0_5 = arith.constant 0 : index
    %c0_6 = arith.constant 0 : index
    %6 = vector.load %arg4[%c0_5, %c0_6] : memref<256x1xbf16, #tpu.memory_space<vmem>>, vector<256x1xbf16>
    %cst_7 = arith.constant dense<0.000000e+00> : vector<2x1xf32>
    %7 = tpu.matmul %3, %6, %cst_7 {dimension_numbers = #tpu.dot_dimension_numbers<[1], [0], [0], [1], [0, 0, 1, 1], [], []>} : vector<2x256xbf16>, vector<256x1xbf16>, vector<2x1xf32> -> vector<2x1xf32>
    %c0_8 = arith.constant 0 : index
    %c0_9 = arith.constant 0 : index
    %8 = vector.load %arg5[%c0_8, %c0_9] : memref<1x2xf32, #tpu.memory_space<vmem>>, vector<1x2xf32>
    %9 = vector.broadcast %8 : vector<1x2xf32> to vector<2x2xf32>
    %10 = arith.addf %5, %9 : vector<2x2xf32>
    %c0_10 = arith.constant 0 : index
    %c0_11 = arith.constant 0 : index
    %11 = vector.load %arg7[%c0_10, %c0_11] : memref<2x2xf32, #tpu.memory_space<vmem>>, vector<2x2xf32>
    tpu.vector_store %arg7[%c0_10, %c0_11], %10 {strides = array<i32>} : memref<2x2xf32, #tpu.memory_space<vmem>>, vector<2x2xf32>,
    %c0_12 = arith.constant 0 : index
    %c0_13 = arith.constant 0 : index
    %12 = vector.load %arg6[%c0_12, %c0_13] : memref<1x1xf32, #tpu.memory_space<vmem>>, vector<1x1xf32>
    %13 = vector.broadcast %12 : vector<1x1xf32> to vector<2x1xf32>
    %14 = arith.addf %7, %13 : vector<2x1xf32>
    %c0_14 = arith.constant 0 : index
    %c0_15 = arith.constant 0 : index
    %15 = vector.load %arg8[%c0_14, %c0_15] : memref<2x1xf32, #tpu.memory_space<vmem>>, vector<2x1xf32>
    tpu.vector_store %arg8[%c0_14, %c0_15], %14 {strides = array<i32>} : memref<2x1xf32, #tpu.memory_space<vmem>>, vector<2x1xf32>,
    return
  }
  func.func @transform_0(%arg0: i32) -> (i32, i32) {
    %c0_i32 = arith.constant 0 : i32
    %c0_i32_0 = arith.constant 0 : i32
    return %arg0, %c0_i32 : i32, i32
  }
  func.func @transform_1(%arg0: i32) -> (i32, i32) {
    %c0_i32 = arith.constant 0 : i32
    %c0_i32_0 = arith.constant 0 : i32
    return %arg0, %c0_i32 : i32, i32
  }
  func.func @transform_2(%arg0: i32) -> (i32, i32) {
    %c0_i32 = arith.constant 0 : i32
    %c0_i32_0 = arith.constant 0 : i32
    %c0_i32_1 = arith.constant 0 : i32
    return %c0_i32, %c0_i32_0 : i32, i32
  }
  func.func @transform_3(%arg0: i32) -> (i32, i32) {
    %c0_i32 = arith.constant 0 : i32
    %c0_i32_0 = arith.constant 0 : i32
    %c0_i32_1 = arith.constant 0 : i32
    return %c0_i32, %c0_i32_0 : i32, i32
  }
  func.func @transform_4(%arg0: i32) -> (i32, i32) {
    %c0_i32 = arith.constant 0 : i32
    %c0_i32_0 = arith.constant 0 : i32
    %c0_i32_1 = arith.constant 0 : i32
    return %c0_i32, %c0_i32_0 : i32, i32
  }
  func.func @transform_5(%arg0: i32) -> (i32, i32) {
    %c0_i32 = arith.constant 0 : i32
    %c0_i32_0 = arith.constant 0 : i32
    %c0_i32_1 = arith.constant 0 : i32
    return %c0_i32, %c0_i32_0 : i32, i32
  }
  func.func @transform_6(%arg0: i32) -> (i32, i32) {
    %c0_i32 = arith.constant 0 : i32
    %c0_i32_0 = arith.constant 0 : i32
    return %arg0, %c0_i32 : i32, i32
  }
  func.func @transform_7(%arg0: i32) -> (i32, i32) {
    %c0_i32 = arith.constant 0 : i32
    %c0_i32_0 = arith.constant 0 : i32
    return %arg0, %c0_i32 : i32, i32
  }
}

</mosaic_0001>

<llo_original>
// kernel: agender_classification_head_v2.1
$region0: #{agender_classification_head_v2.1}
  #allocation0 [shape = 'u32[]', space=smem, size = 0x4, offset = 0x4, fixed_abs, tag = 'smem constant byte address 0x4 - core index']
  #allocation1 [shape = 'u32[144,128]{1,0:T(1,128)}', space=vmem, size = 0x12000, scoped, tag = 'internal scratch']
  #allocation2 [shape = 'f32[1,1]{1,0:T(1,128)S(1)}', space=vmem, size = 0x200, scoped, tag = 'scoped memory for agender_classification_head_v2.1']
  %s0 = inlined_call_operand.vmem [shape: f32[2,256], index: 0, kind: input, shape index: {}]
  %s1 = inlined_call_operand.vmem [shape: f32[2,256], index: 1, kind: input, shape index: {}]
  %s2 = inlined_call_operand.vmem [shape: bf16[256,2], index: 2, kind: input, shape index: {}]
  %s3 = inlined_call_operand.vmem [shape: bf16[256,1], index: 3, kind: input, shape index: {}]
  %s4 = inlined_call_operand.vmem [shape: f32[1,2], index: 4, kind: input, shape index: {}]
  %s5 = inlined_call_operand.<no memory space> [shape: f32[1,1], index: 5, kind: input, shape index: {}]
  %s6 = inlined_call_operand.hbm [shape: f32[2,2], index: 6, kind: output, shape index: {0}]
  %s7 = inlined_call_operand.vmem [shape: f32[2,1], index: 7, kind: output, shape index: {1}]
  %8 = xla_tuple %s6, %s7
  %s9 = sld [smem:[#allocation0]]
  $region42: #{agender_classification_head_v2.1} parent=0
    _
  %s11 = ssub.s32 1, %s9
  %s12 = scalar_select 0, %s11, %s9
  %v13 = vstv %s5
  %14 = vst [vmem:[#allocation2] sm:$0x1] %v13
  $region1: #{agender_classification_head_v2.1} parent=0
    #allocation3 [shape = 'u8[1024]{0}', space=vmem, size = 0x400, scoped, tag = 'output window, operand 0, single buffered']
    #allocation4 [shape = 's32[1]{0}', space=sflag, size = 0x4, scoped, tag = 'scoped memory for agender_classification_head_v2.1']
    %15 = vsyncpa [#allocation4], 0
    // Predicated region
    $region2: #{agender_classification_head_v2.1} parent=1 // pred_check
      _
    $region3: #{agender_classification_head_v2.1} parent=1 // pred_check_branch
      %17 = sbr.rel (0) target = $region5
    $region4: #{agender_classification_head_v2.1} parent=1 // pred_region
      _
    $region5: #{agender_classification_head_v2.1} parent=1 // pred_fallthru
      _
    // Predicated region
    $region6: #{agender_classification_head_v2.1} parent=1 // pred_check
      _
    $region7: #{agender_classification_head_v2.1} parent=1 // pred_check_branch
      %19 = sbr.rel (0) target = $region9
    $region8: #{agender_classification_head_v2.1} parent=1 // pred_region
      _
    $region9: #{agender_classification_head_v2.1} parent=1 // pred_fallthru
      _
    // Predicated region
    $region10: #{agender_classification_head_v2.1} parent=1 // pred_check
      _
    $region11: #{agender_classification_head_v2.1} parent=1 // pred_check_branch
      %21 = sbr.rel (0) target = $region13
    $region12: #{agender_classification_head_v2.1} parent=1 // pred_region
      _
    $region13: #{agender_classification_head_v2.1} parent=1 // pred_fallthru
      _
    // Predicated region
    $region14: #{agender_classification_head_v2.1} parent=1 // pred_check
      _
    $region15: #{agender_classification_head_v2.1} parent=1 // pred_check_branch
      %23 = sbr.rel (0) target = $region17
    $region16: #{agender_classification_head_v2.1} parent=1 // pred_region
      _
    $region17: #{agender_classification_head_v2.1} parent=1 // pred_fallthru
      _
    // Predicated region
    $region18: #{agender_classification_head_v2.1} parent=1 // pred_check
      _
    $region19: #{agender_classification_head_v2.1} parent=1 // pred_check_branch
      %25 = sbr.rel (0) target = $region21
    $region20: #{agender_classification_head_v2.1} parent=1 // pred_region
      _
    $region21: #{agender_classification_head_v2.1} parent=1 // pred_fallthru
      _
    // Predicated region
    $region22: #{agender_classification_head_v2.1} parent=1 // pred_check
      _
    $region23: #{agender_classification_head_v2.1} parent=1 // pred_check_branch
      %27 = sbr.rel (0) target = $region25
    $region24: #{agender_classification_head_v2.1} parent=1 // pred_region
      _
    $region25: #{agender_classification_head_v2.1} parent=1 // pred_fallthru
      _
    %v29 = vld [vmem:[%s0] sm:$0xf]
    %v32 = vunpack.c.l.s4 1983009808
    %v33 = vunpack.c.0.s8 %v32
    %v34 = vlaneseq
    %v35 = vshrl.u32 %v34, 7
    %v36 = vsub.s32 %v33, %v35
    %v37 = vrot.slane %v29, %v36
    %v38 = vcombine.high %v37, %v37
    %v41 = vpack.c.bf16 %v37, %v37
    %v42 = vpack.c.bf16 %v38, %v38
    %v43 = vld [vmem:[%s1] sm:$0xf]
    %v46 = vunpack.c.l.s4 1983009808
    %v47 = vunpack.c.0.s8 %v46
    %v48 = vlaneseq
    %v49 = vshrl.u32 %v48, 7
    %v50 = vsub.s32 %v47, %v49
    %v51 = vrot.slane %v43, %v50
    %v52 = vcombine.high %v51, %v51
    %v55 = vpack.c.bf16 %v51, %v51
    %v56 = vpack.c.bf16 %v52, %v52
    %v57 = vld [vmem:[%s2] sm:$0xf]
    %v58 = vld [vmem:[%s2 + $0x4] sm:$0xf]
    %v59 = vld [vmem:[%s2 + $0x8] sm:$0xf]
    %v60 = vld [vmem:[%s2 + $0xc] sm:$0xf]
    %v61 = vld [vmem:[%s2 + $0x10] sm:$0xf]
    %v62 = vld [vmem:[%s2 + $0x14] sm:$0xf]
    %v63 = vld [vmem:[%s2 + $0x18] sm:$0xf]
    %v64 = vld [vmem:[%s2 + $0x1c] sm:$0xf]
    %v65 = vld [vmem:[%s2 + $0x20] sm:$0xf]
    %v66 = vld [vmem:[%s2 + $0x24] sm:$0xf]
    %v67 = vld [vmem:[%s2 + $0x28] sm:$0xf]
    %v68 = vld [vmem:[%s2 + $0x2c] sm:$0xf]
    %v69 = vld [vmem:[%s2 + $0x30] sm:$0xf]
    %v70 = vld [vmem:[%s2 + $0x34] sm:$0xf]
    %v71 = vld [vmem:[%s2 + $0x38] sm:$0xf]
    %v72 = vld [vmem:[%s2 + $0x3c] sm:$0xf]
    %v73 = vld [vmem:[%s2 + $0x40] sm:$0xf]
    %v74 = vld [vmem:[%s2 + $0x44] sm:$0xf]
    %v75 = vld [vmem:[%s2 + $0x48] sm:$0xf]
    %v76 = vld [vmem:[%s2 + $0x4c] sm:$0xf]
    %v77 = vld [vmem:[%s2 + $0x50] sm:$0xf]
    %v78 = vld [vmem:[%s2 + $0x54] sm:$0xf]
    %v79 = vld [vmem:[%s2 + $0x58] sm:$0xf]
    %v80 = vld [vmem:[%s2 + $0x5c] sm:$0xf]
    %v81 = vld [vmem:[%s2 + $0x60] sm:$0xf]
    %v82 = vld [vmem:[%s2 + $0x64] sm:$0xf]
    %v83 = vld [vmem:[%s2 + $0x68] sm:$0xf]
    %v84 = vld [vmem:[%s2 + $0x6c] sm:$0xf]
    %v85 = vld [vmem:[%s2 + $0x70] sm:$0xf]
    %v86 = vld [vmem:[%s2 + $0x74] sm:$0xf]
    %v87 = vld [vmem:[%s2 + $0x78] sm:$0xf]
    %v88 = vld [vmem:[%s2 + $0x7c] sm:$0xf]
    %v89 = vld [vmem:[%s3] sm:$0xf]
    %v90 = vld [vmem:[%s3 + $0x4] sm:$0xf]
    %v91 = vld [vmem:[%s3 + $0x8] sm:$0xf]
    %v92 = vld [vmem:[%s3 + $0xc] sm:$0xf]
    %v93 = vld [vmem:[%s3 + $0x10] sm:$0xf]
    %v94 = vld [vmem:[%s3 + $0x14] sm:$0xf]
    %v95 = vld [vmem:[%s3 + $0x18] sm:$0xf]
    %v96 = vld [vmem:[%s3 + $0x1c] sm:$0xf]
    %v97 = vld [vmem:[%s3 + $0x20] sm:$0xf]
    %v98 = vld [vmem:[%s3 + $0x24] sm:$0xf]
    %v99 = vld [vmem:[%s3 + $0x28] sm:$0xf]
    %v100 = vld [vmem:[%s3 + $0x2c] sm:$0xf]
    %v101 = vld [vmem:[%s3 + $0x30] sm:$0xf]
    %v102 = vld [vmem:[%s3 + $0x34] sm:$0xf]
    %v103 = vld [vmem:[%s3 + $0x38] sm:$0xf]
    %v104 = vld [vmem:[%s3 + $0x3c] sm:$0xf]
    %v105 = vld [vmem:[%s3 + $0x40] sm:$0xf]
    %v106 = vld [vmem:[%s3 + $0x44] sm:$0xf]
    %v107 = vld [vmem:[%s3 + $0x48] sm:$0xf]
    %v108 = vld [vmem:[%s3 + $0x4c] sm:$0xf]
    %v109 = vld [vmem:[%s3 + $0x50] sm:$0xf]
    %v110 = vld [vmem:[%s3 + $0x54] sm:$0xf]
    %v111 = vld [vmem:[%s3 + $0x58] sm:$0xf]
    %v112 = vld [vmem:[%s3 + $0x5c] sm:$0xf]
    %v113 = vld [vmem:[%s3 + $0x60] sm:$0xf]
    %v114 = vld [vmem:[%s3 + $0x64] sm:$0xf]
    %v115 = vld [vmem:[%s3 + $0x68] sm:$0xf]
    %v116 = vld [vmem:[%s3 + $0x6c] sm:$0xf]
    %v117 = vld [vmem:[%s3 + $0x70] sm:$0xf]
    %v118 = vld [vmem:[%s3 + $0x74] sm:$0xf]
    %v119 = vld [vmem:[%s3 + $0x78] sm:$0xf]
    %v120 = vld [vmem:[%s3 + $0x7c] sm:$0xf]
    %v121 = vld [vmem:[%s4] sm:$0x1]
    %v123 = vlaneseq
    %v124 = vshrl.u32 %v123, 7
    %v125 = vsub.s32 0, %v124
    %v126 = vrot.slane %v121, %v125
    %v160 = vunpack.c.l.b16 %v57
    %v161 = vunpack.c.l.b16 %v58
    %v162 = vunpack.c.l.b16 %v59
    %v163 = vunpack.c.l.b16 %v60
    %v164 = vunpack.c.l.b16 %v61
    %v165 = vunpack.c.l.b16 %v62
    %v166 = vunpack.c.l.b16 %v63
    %v167 = vunpack.c.l.b16 %v64
    %v168 = vunpack.c.l.b16 %v65
    %v169 = vunpack.c.l.b16 %v66
    %v170 = vunpack.c.l.b16 %v67
    %v171 = vunpack.c.l.b16 %v68
    %v172 = vunpack.c.l.b16 %v69
    %v173 = vunpack.c.l.b16 %v70
    %v174 = vunpack.c.l.b16 %v71
    %v175 = vunpack.c.l.b16 %v72
    %v176 = vunpack.c.l.b16 %v73
    %v177 = vunpack.c.l.b16 %v74
    %v178 = vunpack.c.l.b16 %v75
    %v179 = vunpack.c.l.b16 %v76
    %v180 = vunpack.c.l.b16 %v77
    %v181 = vunpack.c.l.b16 %v78
    %v182 = vunpack.c.l.b16 %v79
    %v183 = vunpack.c.l.b16 %v80
    %v184 = vunpack.c.l.b16 %v81
    %v185 = vunpack.c.l.b16 %v82
    %v186 = vunpack.c.l.b16 %v83
    %v187 = vunpack.c.l.b16 %v84
    %v188 = vunpack.c.l.b16 %v85
    %v189 = vunpack.c.l.b16 %v86
    %v190 = vunpack.c.l.b16 %v87
    %v191 = vunpack.c.l.b16 %v88
    %v192 = vpack.c.b16 %v161, %v160
    %v193 = vpack.c.b16 %v163, %v162
    %v194 = vpack.c.b16 %v165, %v164
    %v195 = vpack.c.b16 %v167, %v166
    %v196 = vpack.c.b16 %v169, %v168
    %v197 = vpack.c.b16 %v171, %v170
    %v198 = vpack.c.b16 %v173, %v172
    %v199 = vpack.c.b16 %v175, %v174
    %v200 = vpack.c.b16 %v177, %v176
    %v201 = vpack.c.b16 %v179, %v178
    %v202 = vpack.c.b16 %v181, %v180
    %v203 = vpack.c.b16 %v183, %v182
    %v204 = vpack.c.b16 %v185, %v184
    %v205 = vpack.c.b16 %v187, %v186
    %v206 = vpack.c.b16 %v189, %v188
    %v207 = vpack.c.b16 %v191, %v190
    %224 = vmatprep.subr.bf16.mxu0 0
    %225 = vmatpush1.bf16.msra.mxu0 %v192
    %226 = vmatprep.subr.bf16.mxu0 0
    %227 = vmatpush1.bf16.msra.mxu0 %v193
    %228 = vmatprep.subr.bf16.mxu0 0
    %229 = vmatpush1.bf16.msra.mxu0 %v194
    %230 = vmatprep.subr.bf16.mxu0 0
    %231 = vmatpush1.bf16.msra.mxu0 %v195
    %232 = vmatprep.subr.bf16.mxu0 0
    %233 = vmatpush1.bf16.msra.mxu0 %v196
    %234 = vmatprep.subr.bf16.mxu0 0
    %235 = vmatpush1.bf16.msra.mxu0 %v197
    %236 = vmatprep.subr.bf16.mxu0 0
    %237 = vmatpush1.bf16.msra.mxu0 %v198
    %238 = vmatprep.subr.bf16.mxu0 0
    %239 = vmatpush1.bf16.msra.mxu0 %v199
    %240 = vmatprep.subr.bf16.mxu0 0
    %241 = vmatpush1.bf16.msra.mxu0 %v200
    %242 = vmatprep.subr.bf16.mxu0 0
    %243 = vmatpush1.bf16.msra.mxu0 %v201
    %244 = vmatprep.subr.bf16.mxu0 0
    %245 = vmatpush1.bf16.msra.mxu0 %v202
    %246 = vmatprep.subr.bf16.mxu0 0
    %247 = vmatpush1.bf16.msra.mxu0 %v203
    %248 = vmatprep.subr.bf16.mxu0 0
    %249 = vmatpush1.bf16.msra.mxu0 %v204
    %250 = vmatprep.subr.bf16.mxu0 0
    %251 = vmatpush1.bf16.msra.mxu0 %v205
    %252 = vmatprep.subr.bf16.mxu0 0
    %253 = vmatpush1.bf16.msra.mxu0 %v206
    %254 = vmatprep.subr.bf16.mxu0 0
    %255 = vmatpush1.bf16.msra.mxu0 %v207
    %256 = vmatprep.mubr.bf16.mxu0 %v42
    %257 = vmatmul.mubr.bf16.gmra.mrb[0].mxu0 %v41
    %v258 = vpop.f32.mrb[0].mxu0
    %v259 = vadd.f32 %v126, %v258
    %v260 = vpop.f32.mrb[0].mxu0
    %v261 = vpop.f32.mrb[0].mxu0
    %v262 = vpop.f32.mrb[0].mxu0
    %263 = vdwg.mxu0
    %vm264 = vcmask 9216
    %265 = vst.msk [vmem:[#allocation3] sm:$0x3] %vm264, %v259
    %v266 = vld [vmem:[#allocation2] sm:$0x1]
    %v268 = vlaneseq
    %v269 = vshrl.u32 %v268, 7
    %v270 = vsub.s32 0, %v269
    %v271 = vrot.slane %v266, %v270
    %v305 = vunpack.c.l.b16 %v89
    %v306 = vunpack.c.l.b16 %v90
    %v307 = vunpack.c.l.b16 %v91
    %v308 = vunpack.c.l.b16 %v92
    %v309 = vunpack.c.l.b16 %v93
    %v310 = vunpack.c.l.b16 %v94
    %v311 = vunpack.c.l.b16 %v95
    %v312 = vunpack.c.l.b16 %v96
    %v313 = vunpack.c.l.b16 %v97
    %v314 = vunpack.c.l.b16 %v98
    %v315 = vunpack.c.l.b16 %v99
    %v316 = vunpack.c.l.b16 %v100
    %v317 = vunpack.c.l.b16 %v101
    %v318 = vunpack.c.l.b16 %v102
    %v319 = vunpack.c.l.b16 %v103
    %v320 = vunpack.c.l.b16 %v104
    %v321 = vunpack.c.l.b16 %v105
    %v322 = vunpack.c.l.b16 %v106
    %v323 = vunpack.c.l.b16 %v107
    %v324 = vunpack.c.l.b16 %v108
    %v325 = vunpack.c.l.b16 %v109
    %v326 = vunpack.c.l.b16 %v110
    %v327 = vunpack.c.l.b16 %v111
    %v328 = vunpack.c.l.b16 %v112
    %v329 = vunpack.c.l.b16 %v113
    %v330 = vunpack.c.l.b16 %v114
    %v331 = vunpack.c.l.b16 %v115
    %v332 = vunpack.c.l.b16 %v116
    %v333 = vunpack.c.l.b16 %v117
    %v334 = vunpack.c.l.b16 %v118
    %v335 = vunpack.c.l.b16 %v119
    %v336 = vunpack.c.l.b16 %v120
    %v337 = vpack.c.b16 %v306, %v305
    %v338 = vpack.c.b16 %v308, %v307
    %v339 = vpack.c.b16 %v310, %v309
    %v340 = vpack.c.b16 %v312, %v311
    %v341 = vpack.c.b16 %v314, %v313
    %v342 = vpack.c.b16 %v316, %v315
    %v343 = vpack.c.b16 %v318, %v317
    %v344 = vpack.c.b16 %v320, %v319
    %v345 = vpack.c.b16 %v322, %v321
    %v346 = vpack.c.b16 %v324, %v323
    %v347 = vpack.c.b16 %v326, %v325
    %v348 = vpack.c.b16 %v328, %v327
    %v349 = vpack.c.b16 %v330, %v329
    %v350 = vpack.c.b16 %v332, %v331
    %v351 = vpack.c.b16 %v334, %v333
    %v352 = vpack.c.b16 %v336, %v335
    %369 = vmatprep.subr.bf16.mxu0 0
    %370 = vmatpush1.bf16.msra.mxu0 %v337
    %371 = vmatprep.subr.bf16.mxu0 0
    %372 = vmatpush1.bf16.msra.mxu0 %v338
    %373 = vmatprep.subr.bf16.mxu0 0
    %374 = vmatpush1.bf16.msra.mxu0 %v339
    %375 = vmatprep.subr.bf16.mxu0 0
    %376 = vmatpush1.bf16.msra.mxu0 %v340
    %377 = vmatprep.subr.bf16.mxu0 0
    %378 = vmatpush1.bf16.msra.mxu0 %v341
    %379 = vmatprep.subr.bf16.mxu0 0
    %380 = vmatpush1.bf16.msra.mxu0 %v342
    %381 = vmatprep.subr.bf16.mxu0 0
    %382 = vmatpush1.bf16.msra.mxu0 %v343
    %383 = vmatprep.subr.bf16.mxu0 0
    %384 = vmatpush1.bf16.msra.mxu0 %v344
    %385 = vmatprep.subr.bf16.mxu0 0
    %386 = vmatpush1.bf16.msra.mxu0 %v345
    %387 = vmatprep.subr.bf16.mxu0 0
    %388 = vmatpush1.bf16.msra.mxu0 %v346
    %389 = vmatprep.subr.bf16.mxu0 0
    %390 = vmatpush1.bf16.msra.mxu0 %v347
    %391 = vmatprep.subr.bf16.mxu0 0
    %392 = vmatpush1.bf16.msra.mxu0 %v348
    %393 = vmatprep.subr.bf16.mxu0 0
    %394 = vmatpush1.bf16.msra.mxu0 %v349
    %395 = vmatprep.subr.bf16.mxu0 0
    %396 = vmatpush1.bf16.msra.mxu0 %v350
    %397 = vmatprep.subr.bf16.mxu0 0
    %398 = vmatpush1.bf16.msra.mxu0 %v351
    %399 = vmatprep.subr.bf16.mxu0 0
    %400 = vmatpush1.bf16.msra.mxu0 %v352
    %401 = vmatprep.mubr.bf16.mxu0 %v56
    %402 = vmatmul.mubr.bf16.gmra.mrb[0].mxu0 %v55
    %v403 = vpop.f32.mrb[0].mxu0
    %v404 = vadd.f32 %v271, %v403
    %v405 = vpop.f32.mrb[0].mxu0
    %v406 = vpop.f32.mrb[0].mxu0
    %v407 = vpop.f32.mrb[0].mxu0
    %408 = vdwg.mxu0
    %vm409 = vcmask 1024
    %410 = vst.msk [vmem:[%s7] sm:$0x3] %vm409, %v404
    // Predicated region
    $region26: #{agender_classification_head_v2.1} parent=1 // pred_check
      _
    $region27: #{agender_classification_head_v2.1} parent=1 // pred_check_branch
      %412 = sbr.rel (0) target = $region29
    $region28: #{agender_classification_head_v2.1} parent=1 // pred_region
      %s414 = ssub.s32 32, 32
      %415 = vsyncadd [#allocation4], %s414
      %s417 = sshll.u32 [#allocation3], 4
      %s418 = int_to_ptr.vmem [resolvable:$true] %s417
      %420 = dma.vmem_to_hbm [thread:$0]  %s418, 32, %s6, [#allocation4]
    $region29: #{agender_classification_head_v2.1} parent=1 // pred_fallthru
      _
    // Predicated region
    $region30: #{agender_classification_head_v2.1} parent=1 // pred_check
      _
    $region31: #{agender_classification_head_v2.1} parent=1 // pred_check_branch
      %422 = sbr.rel (0) target = $region33
    $region32: #{agender_classification_head_v2.1} parent=1 // pred_region
      _
    $region33: #{agender_classification_head_v2.1} parent=1 // pred_fallthru
      _
    // Predicated region
    $region34: #{agender_classification_head_v2.1} parent=1 // pred_check
      _
    $region35: #{agender_classification_head_v2.1} parent=1 // pred_check_branch
      %424 = sbr.rel (0) target = $region37
    $region36: #{agender_classification_head_v2.1} parent=1 // pred_region
      %425 = dma.done [#allocation4], 32
    $region37: #{agender_classification_head_v2.1} parent=1 // pred_fallthru
      _
    // Predicated region
    $region38: #{agender_classification_head_v2.1} parent=1 // pred_check
      _
    $region39: #{agender_classification_head_v2.1} parent=1 // pred_check_branch
      %427 = sbr.rel (0) target = $region41
    $region40: #{agender_classification_head_v2.1} parent=1 // pred_region
      _
    $region41: #{agender_classification_head_v2.1} parent=1 // pred_fallthru
      _
    %428 = vsyncpa [#allocation4], 1

</llo_original>
